<compile_context>
chip_gen: v7x
topology: tpu7x:2x2x1
jax: 0.10.0
libtpu: 0.0.40
codegen_flags: <defaults>
</compile_context>

<pallas_src>
import functools

import jax
import jax.numpy as jnp
from jax.experimental import pallas as pl
from jax.experimental.pallas import tpu as pltpu

NEG_SLOPE = 0.2        # PyG GATConv default negative_slope
MASK_VAL = -1e30       # additive mask for non-edges (finite in bf16 and f32)
LANE = 128             # TPU lane width


def _round_up(x, m):
    return ((x + m - 1) // m) * m


def _use_bf16_exp():
    """bf16 EUP exists on v6e/v7x only; keep f32 exp elsewhere (v5e & older)."""
    try:
        kind = jax.devices()[0].device_kind.lower()
    except Exception:
        return False
    return any(tag in kind for tag in ("v6", "v7", "tpu7"))


def _gat_block(x, w_aug, bias, mask_bias, *, heads, c, activation, exp_dtype):
    """One full GATConv layer (all heads, batched) on VMEM-resident values."""
    hc = heads * c
    s_off = _round_up(hc, LANE)          # score columns start on a lane boundary

    # Single MXU push (bf16 operands, f32 accumulate): projected features of
    # every head [N, H*C] plus both attention-score vectors [N, H] each.
    proj = jnp.dot(x.astype(jnp.bfloat16), w_aug.astype(jnp.bfloat16),
                   preferred_element_type=jnp.float32)            # [N, s_off+2H]
    xpb = proj[:, :hc].astype(jnp.bfloat16)                       # [N, H*C] (MXU rhs)
    s_src = proj[:, s_off:s_off + heads]                          # [N, H]
    s_dst = proj[:, s_off + heads:s_off + 2 * heads]              # [N, H]

    # Head-batched attention logits: e[h, i, j] = s_dst[i, h] + s_src[j, h]
    sd = jnp.transpose(s_dst)[:, :, None]                         # [H, N, 1]
    ss = jnp.transpose(s_src)[:, None, :]                         # [H, 1, N]
    e = sd + ss                                                   # [H, N, N]
    e = jnp.maximum(e, NEG_SLOPE * e)                             # LeakyReLU(0.2)
    e = e + mask_bias[None, :, :]                                 # bf16 mask, upcast in-flight
    m = jnp.max(e, axis=-1, keepdims=True)                        # finite (self-loops)
    p = jnp.exp((e - m).astype(exp_dtype))                        # masked lanes -> 0
    denom = jnp.sum(p.astype(jnp.float32), axis=-1, keepdims=True)  # [H, N, 1] > 0

    # One batched MXU contraction for all heads (bf16 operands), then apply the
    # softmax normalization AFTER the matmul (numerically identical).
    xph = jnp.stack([xpb[:, h * c:(h + 1) * c] for h in range(heads)], axis=0)  # [H, N, C]
    out = jnp.einsum("hij,hjc->hic", p.astype(jnp.bfloat16), xph,
                     preferred_element_type=jnp.float32)          # [H, N, C]
    # TODO(synk): approx reciprocal (~1e-3 rel. err) is fine for inference; use
    # approx=False for strict f32 parity tests against the PyTorch reference.
    out = out * pl.reciprocal(denom, approx=True)

    # Concatenated-head layout [N, H*C] + bias, then activation.
    out = jnp.concatenate([out[h] for h in range(heads)], axis=-1) + bias
    if activation == "relu":
        return jnp.maximum(out, 0.0)
    return jax.nn.sigmoid(out)


def _decoder_kernel(x_ref, maskb_ref, w1_ref, b1_ref, w2_ref, b2_ref, out_ref,
                    *, heads, c1, c2, exp_dtype):
    mask_bias = maskb_ref[...]                                    # stays bf16
    h1 = _gat_block(x_ref[...], w1_ref[...], b1_ref[...], mask_bias,
                    heads=heads, c=c1, activation="relu", exp_dtype=exp_dtype)
    out = _gat_block(h1, w2_ref[...], b2_ref[...], mask_bias,
                     heads=heads, c=c2, activation="sigmoid", exp_dtype=exp_dtype)
    out_ref[...] = out.astype(out_ref.dtype)


def pack_gat_params(w, a_src, a_dst, bias):
    """Pack per-head GATConv params.

    Returns (W_aug [Fin, round_up(H*C,128) + 2H], bias [1, H*C]) where the
    first H*C columns are the per-head projections (concat layout), columns are
    zero-padded up to a 128-lane boundary, then W@a_src [Fin,H], W@a_dst [Fin,H].
    """
    heads, f_in, c = w.shape
    hc = heads * c
    s_off = _round_up(hc, LANE)
    w_all = jnp.transpose(w, (1, 0, 2)).reshape(f_in, hc)          # [Fin, H*C]
    w_src = jnp.einsum("hfc,hc->fh", w, a_src[..., 0])             # [Fin, H]
    w_dst = jnp.einsum("hfc,hc->fh", w, a_dst[..., 0])             # [Fin, H]
    pad = jnp.zeros((f_in, s_off - hc), jnp.float32)
    w_aug = jnp.concatenate([w_all, pad, w_src, w_dst], axis=1)    # [Fin, s_off+2H]
    bias_cat = bias[:, 0, :].reshape(1, hc)                        # [1, H*C]
    return w_aug, bias_cat


def init_gat_params(key, f_in, c, heads):
    """Deterministic synthetic parameters for one GATConv layer."""
    k_w, k_s, k_d, k_b = jax.random.split(key, 4)
    scale = 1.0 / jnp.sqrt(jnp.float32(f_in))
    w = jax.random.normal(k_w, (heads, f_in, c), jnp.float32) * scale
    a_src = jax.random.normal(k_s, (heads, c, 1), jnp.float32) * 0.1
    a_dst = jax.random.normal(k_d, (heads, c, 1), jnp.float32) * 0.1
    bias = jax.random.normal(k_b, (heads, 1, c), jnp.float32) * 0.01
    return w, a_src, a_dst, bias


def decoder_forward(packed_params, z, edge_index, edge_attr, *, heads=4):
    """z = relu(GAT1(z)); return sigmoid(GAT2(z)).  One fused Pallas call."""
    del edge_attr  # ignored, see TODO(synk) at top
    (w1, b1), (w2, b2) = packed_params
    n = z.shape[0]
    c1 = b1.shape[-1] // heads
    c2 = b2.shape[-1] // heads

    # Additive edge mask built directly in bf16 (single O(N^2) buffer, no f32
    # pre-passes): 0 for each edge (src -> dst) and for self-loops, -1e30 else.
    mask_bias = jnp.full((n, n), MASK_VAL, jnp.bfloat16)
    mask_bias = mask_bias.at[edge_index[1], edge_index[0]].set(0.0)
    diag = jnp.arange(n)
    mask_bias = mask_bias.at[diag, diag].set(0.0)

    exp_dtype = jnp.bfloat16 if _use_bf16_exp() else jnp.float32
    kernel = functools.partial(_decoder_kernel, heads=heads, c1=c1, c2=c2,
                               exp_dtype=exp_dtype)
    vmem = pl.BlockSpec(memory_space=pltpu.MemorySpace.VMEM)
    return pl.pallas_call(
        kernel,
        out_shape=jax.ShapeDtypeStruct((n, heads * c2), jnp.float32),
        in_specs=[vmem] * 6,
        out_specs=vmem,
        compiler_params=pltpu.CompilerParams(
            vmem_limit_bytes=48 * 1024 * 1024),
    )(z.astype(jnp.float32), mask_bias, w1, b1, w2, b2)


if __name__ == "__main__":
    key = jax.random.PRNGKey(0)
    N, E = 16, 32
    in_channels, hidden_channels, num_features, heads = 8, 8, 16, 4

    kz, ke, ka, kp1, kp2 = jax.random.split(key, 5)
    z = jax.random.normal(kz, (N, in_channels), jnp.float32)
    edge_index = jax.random.randint(ke, (2, E), 0, N, dtype=jnp.int32)
    edge_attr = jax.random.normal(ka, (E, 4), jnp.float32)

    p1 = pack_gat_params(*init_gat_params(kp1, in_channels, hidden_channels, heads))
    p2 = pack_gat_params(*init_gat_params(kp2, hidden_channels * heads,
                                          num_features // 4, heads))

    out = decoder_forward((p1, p2), z, edge_index, edge_attr, heads=heads)
    out = jax.block_until_ready(out)

    assert out.shape == (N, heads * (num_features // 4)), out.shape
    assert bool(jnp.all(jnp.isfinite(out)))
    assert bool(jnp.all((out >= 0.0) & (out <= 1.0)))  # sigmoid output range
    print("KERNEL_OK")
</pallas_src>

<mosaic_0001>
module attributes {stable_mosaic.version = 11 : i64} {
  func.func @_decoder_kernel(%arg0: memref<16x8xf32, #tpu.memory_space<vmem>>, %arg1: memref<16x16xbf16, #tpu.memory_space<vmem>>, %arg2: memref<8x136xf32, #tpu.memory_space<vmem>>, %arg3: memref<1x32xf32, #tpu.memory_space<vmem>>, %arg4: memref<32x136xf32, #tpu.memory_space<vmem>>, %arg5: memref<1x16xf32, #tpu.memory_space<vmem>>, %arg6: memref<16x16xf32, #tpu.memory_space<vmem>>) attributes {dimension_semantics = [], scalar_prefetch = 0 : i64, scratch_operands = 0 : i64, tpu.core_type = #tpu.core_type<tc>} {
    %c0 = arith.constant 0 : index
    %c0_0 = arith.constant 0 : index
    %0 = vector.load %arg1[%c0, %c0_0] : memref<16x16xbf16, #tpu.memory_space<vmem>>, vector<16x16xbf16>
    %c0_1 = arith.constant 0 : index
    %c0_2 = arith.constant 0 : index
    %1 = vector.load %arg0[%c0_1, %c0_2] : memref<16x8xf32, #tpu.memory_space<vmem>>, vector<16x8xf32>
    %c0_3 = arith.constant 0 : index
    %c0_4 = arith.constant 0 : index
    %2 = vector.load %arg2[%c0_3, %c0_4] : memref<8x136xf32, #tpu.memory_space<vmem>>, vector<8x136xf32>
    %c0_5 = arith.constant 0 : index
    %c0_6 = arith.constant 0 : index
    %3 = vector.load %arg3[%c0_5, %c0_6] : memref<1x32xf32, #tpu.memory_space<vmem>>, vector<1x32xf32>
    %4 = arith.truncf %1 : vector<16x8xf32> to vector<16x8xbf16>
    %5 = arith.truncf %2 : vector<8x136xf32> to vector<8x136xbf16>
    %cst = arith.constant dense<0.000000e+00> : vector<16x136xf32>
    %6 = tpu.matmul %4, %5, %cst {dimension_numbers = #tpu.dot_dimension_numbers<[1], [0], [0], [1], [0, 0, 1, 1], [], []>} : vector<16x8xbf16>, vector<8x136xbf16>, vector<16x136xf32> -> vector<16x136xf32>
    %7 = vector.extract_strided_slice %6 {offsets = [0, 0], sizes = [16, 32], strides = [1, 1]} : vector<16x136xf32> to vector<16x32xf32>
    %8 = arith.truncf %7 : vector<16x32xf32> to vector<16x32xbf16>
    %9 = vector.extract_strided_slice %6 {offsets = [0, 128], sizes = [16, 4], strides = [1, 1]} : vector<16x136xf32> to vector<16x4xf32>
    %10 = vector.extract_strided_slice %6 {offsets = [0, 132], sizes = [16, 4], strides = [1, 1]} : vector<16x136xf32> to vector<16x4xf32>
    %11 = tpu.transpose %10, [1, 0] : vector<16x4xf32> -> vector<4x16xf32>
    %12 = vector.shape_cast %11 : vector<4x16xf32> to vector<4x16x1xf32>
    %13 = tpu.transpose %9, [1, 0] : vector<16x4xf32> -> vector<4x16xf32>
    %14 = vector.shape_cast %13 : vector<4x16xf32> to vector<4x1x16xf32>
    %15 = vector.broadcast %12 : vector<4x16x1xf32> to vector<4x16x16xf32>
    %16 = vector.broadcast %14 : vector<4x1x16xf32> to vector<4x16x16xf32>
    %17 = arith.addf %15, %16 : vector<4x16x16xf32>
    %cst_7 = arith.constant 2.000000e-01 : f32
    %18 = vector.broadcast %cst_7 : f32 to vector<4x16x16xf32>
    %19 = arith.mulf %18, %17 : vector<4x16x16xf32>
    %20 = arith.maximumf %17, %19 : vector<4x16x16xf32>
    %21 = vector.shape_cast %0 : vector<16x16xbf16> to vector<1x16x16xbf16>
    %22 = arith.extf %21 : vector<1x16x16xbf16> to vector<1x16x16xf32>
    %23 = vector.broadcast %22 : vector<1x16x16xf32> to vector<4x16x16xf32>
    %24 = arith.addf %20, %23 : vector<4x16x16xf32>
    %cst_8 = arith.constant dense<0xFF800000> : vector<4x16xf32>
    %25 = vector.multi_reduction <maximumf>, %24, %cst_8 [2] : vector<4x16x16xf32> to vector<4x16xf32>
    %26 = vector.shape_cast %25 : vector<4x16xf32> to vector<4x16x1xf32>
    %27 = vector.broadcast %26 : vector<4x16x1xf32> to vector<4x16x16xf32>
    %28 = arith.subf %24, %27 : vector<4x16x16xf32>
    %29 = math.exp %28 : vector<4x16x16xf32>
    %cst_9 = arith.constant dense<0.000000e+00> : vector<4x16xf32>
    %30 = vector.multi_reduction <add>, %29, %cst_9 [2] : vector<4x16x16xf32> to vector<4x16xf32>
    %31 = vector.shape_cast %30 : vector<4x16xf32> to vector<4x16x1xf32>
    %32 = vector.extract_strided_slice %8 {offsets = [0, 0], sizes = [16, 8], strides = [1, 1]} : vector<16x32xbf16> to vector<16x8xbf16>
    %33 = vector.extract_strided_slice %8 {offsets = [0, 8], sizes = [16, 8], strides = [1, 1]} : vector<16x32xbf16> to vector<16x8xbf16>
    %34 = vector.extract_strided_slice %8 {offsets = [0, 16], sizes = [16, 8], strides = [1, 1]} : vector<16x32xbf16> to vector<16x8xbf16>
    %35 = vector.extract_strided_slice %8 {offsets = [0, 24], sizes = [16, 8], strides = [1, 1]} : vector<16x32xbf16> to vector<16x8xbf16>
    %36 = vector.shape_cast %32 : vector<16x8xbf16> to vector<1x16x8xbf16>
    %37 = vector.shape_cast %33 : vector<16x8xbf16> to vector<1x16x8xbf16>
    %38 = vector.shape_cast %34 : vector<16x8xbf16> to vector<1x16x8xbf16>
    %39 = vector.shape_cast %35 : vector<16x8xbf16> to vector<1x16x8xbf16>
    %40 = tpu.concatenate %36, %37, %38, %39 in 0 : vector<1x16x8xbf16>, vector<1x16x8xbf16>, vector<1x16x8xbf16>, vector<1x16x8xbf16> -> vector<4x16x8xbf16>
    %41 = arith.truncf %29 : vector<4x16x16xf32> to vector<4x16x16xbf16>
    "tpu.trace_start"() <{level = 10 : i32, message = "hij,hjc->hic"}> : () -> ()
    %cst_10 = arith.constant dense<0.000000e+00> : vector<4x16x8xf32>
    %42 = tpu.matmul %41, %40, %cst_10 {dimension_numbers = #tpu.dot_dimension_numbers<[2], [1], [1], [2], [0, 0, 0, 1, 1, 2], [0], [0]>} : vector<4x16x16xbf16>, vector<4x16x8xbf16>, vector<4x16x8xf32> -> vector<4x16x8xf32>
    "tpu.trace_stop"() : () -> ()
    %43 = tpu.reciprocal %31 {approx = true} : vector<4x16x1xf32> -> vector<4x16x1xf32>
    %44 = vector.broadcast %43 : vector<4x16x1xf32> to vector<4x16x8xf32>
    %45 = arith.mulf %42, %44 : vector<4x16x8xf32>
    %46 = vector.extract_strided_slice %45 {offsets = [0, 0, 0], sizes = [1, 16, 8], strides = [1, 1, 1]} : vector<4x16x8xf32> to vector<1x16x8xf32>
    %47 = vector.shape_cast %46 : vector<1x16x8xf32> to vector<16x8xf32>
    %48 = vector.extract_strided_slice %45 {offsets = [1, 0, 0], sizes = [1, 16, 8], strides = [1, 1, 1]} : vector<4x16x8xf32> to vector<1x16x8xf32>
    %49 = vector.shape_cast %48 : vector<1x16x8xf32> to vector<16x8xf32>
    %50 = vector.extract_strided_slice %45 {offsets = [2, 0, 0], sizes = [1, 16, 8], strides = [1, 1, 1]} : vector<4x16x8xf32> to vector<1x16x8xf32>
    %51 = vector.shape_cast %50 : vector<1x16x8xf32> to vector<16x8xf32>
    %52 = vector.extract_strided_slice %45 {offsets = [3, 0, 0], sizes = [1, 16, 8], strides = [1, 1, 1]} : vector<4x16x8xf32> to vector<1x16x8xf32>
    %53 = vector.shape_cast %52 : vector<1x16x8xf32> to vector<16x8xf32>
    %54 = tpu.concatenate %47, %49, %51, %53 in 1 : vector<16x8xf32>, vector<16x8xf32>, vector<16x8xf32>, vector<16x8xf32> -> vector<16x32xf32>
    %55 = vector.broadcast %3 : vector<1x32xf32> to vector<16x32xf32>
    %56 = arith.addf %54, %55 : vector<16x32xf32>
    %cst_11 = arith.constant 0.000000e+00 : f32
    %57 = vector.broadcast %cst_11 : f32 to vector<16x32xf32>
    %58 = arith.maximumf %56, %57 : vector<16x32xf32>
    %c0_12 = arith.constant 0 : index
    %c0_13 = arith.constant 0 : index
    %59 = vector.load %arg4[%c0_12, %c0_13] : memref<32x136xf32, #tpu.memory_space<vmem>>, vector<32x136xf32>
    %c0_14 = arith.constant 0 : index
    %c0_15 = arith.constant 0 : index
    %60 = vector.load %arg5[%c0_14, %c0_15] : memref<1x16xf32, #tpu.memory_space<vmem>>, vector<1x16xf32>
    %61 = arith.truncf %58 : vector<16x32xf32> to vector<16x32xbf16>
    %62 = arith.truncf %59 : vector<32x136xf32> to vector<32x136xbf16>
    %cst_16 = arith.constant dense<0.000000e+00> : vector<16x136xf32>
    %63 = tpu.matmul %61, %62, %cst_16 {dimension_numbers = #tpu.dot_dimension_numbers<[1], [0], [0], [1], [0, 0, 1, 1], [], []>} : vector<16x32xbf16>, vector<32x136xbf16>, vector<16x136xf32> -> vector<16x136xf32>
    %64 = vector.extract_strided_slice %63 {offsets = [0, 0], sizes = [16, 16], strides = [1, 1]} : vector<16x136xf32> to vector<16x16xf32>
    %65 = arith.truncf %64 : vector<16x16xf32> to vector<16x16xbf16>
    %66 = vector.extract_strided_slice %63 {offsets = [0, 128], sizes = [16, 4], strides = [1, 1]} : vector<16x136xf32> to vector<16x4xf32>
    %67 = vector.extract_strided_slice %63 {offsets = [0, 132], sizes = [16, 4], strides = [1, 1]} : vector<16x136xf32> to vector<16x4xf32>
    %68 = tpu.transpose %67, [1, 0] : vector<16x4xf32> -> vector<4x16xf32>
    %69 = vector.shape_cast %68 : vector<4x16xf32> to vector<4x16x1xf32>
    %70 = tpu.transpose %66, [1, 0] : vector<16x4xf32> -> vector<4x16xf32>
    %71 = vector.shape_cast %70 : vector<4x16xf32> to vector<4x1x16xf32>
    %72 = vector.broadcast %69 : vector<4x16x1xf32> to vector<4x16x16xf32>
    %73 = vector.broadcast %71 : vector<4x1x16xf32> to vector<4x16x16xf32>
    %74 = arith.addf %72, %73 : vector<4x16x16xf32>
    %cst_17 = arith.constant 2.000000e-01 : f32
    %75 = vector.broadcast %cst_17 : f32 to vector<4x16x16xf32>
    %76 = arith.mulf %75, %74 : vector<4x16x16xf32>
    %77 = arith.maximumf %74, %76 : vector<4x16x16xf32>
    %78 = vector.shape_cast %0 : vector<16x16xbf16> to vector<1x16x16xbf16>
    %79 = arith.extf %78 : vector<1x16x16xbf16> to vector<1x16x16xf32>
    %80 = vector.broadcast %79 : vector<1x16x16xf32> to vector<4x16x16xf32>
    %81 = arith.addf %77, %80 : vector<4x16x16xf32>
    %cst_18 = arith.constant dense<0xFF800000> : vector<4x16xf32>
    %82 = vector.multi_reduction <maximumf>, %81, %cst_18 [2] : vector<4x16x16xf32> to vector<4x16xf32>
    %83 = vector.shape_cast %82 : vector<4x16xf32> to vector<4x16x1xf32>
    %84 = vector.broadcast %83 : vector<4x16x1xf32> to vector<4x16x16xf32>
    %85 = arith.subf %81, %84 : vector<4x16x16xf32>
    %86 = math.exp %85 : vector<4x16x16xf32>
    %cst_19 = arith.constant dense<0.000000e+00> : vector<4x16xf32>
    %87 = vector.multi_reduction <add>, %86, %cst_19 [2] : vector<4x16x16xf32> to vector<4x16xf32>
    %88 = vector.shape_cast %87 : vector<4x16xf32> to vector<4x16x1xf32>
    %89 = vector.extract_strided_slice %65 {offsets = [0, 0], sizes = [16, 4], strides = [1, 1]} : vector<16x16xbf16> to vector<16x4xbf16>
    %90 = vector.extract_strided_slice %65 {offsets = [0, 4], sizes = [16, 4], strides = [1, 1]} : vector<16x16xbf16> to vector<16x4xbf16>
    %91 = vector.extract_strided_slice %65 {offsets = [0, 8], sizes = [16, 4], strides = [1, 1]} : vector<16x16xbf16> to vector<16x4xbf16>
    %92 = vector.extract_strided_slice %65 {offsets = [0, 12], sizes = [16, 4], strides = [1, 1]} : vector<16x16xbf16> to vector<16x4xbf16>
    %93 = vector.shape_cast %89 : vector<16x4xbf16> to vector<1x16x4xbf16>
    %94 = vector.shape_cast %90 : vector<16x4xbf16> to vector<1x16x4xbf16>
    %95 = vector.shape_cast %91 : vector<16x4xbf16> to vector<1x16x4xbf16>
    %96 = vector.shape_cast %92 : vector<16x4xbf16> to vector<1x16x4xbf16>
    %97 = tpu.concatenate %93, %94, %95, %96 in 0 : vector<1x16x4xbf16>, vector<1x16x4xbf16>, vector<1x16x4xbf16>, vector<1x16x4xbf16> -> vector<4x16x4xbf16>
    %98 = arith.truncf %86 : vector<4x16x16xf32> to vector<4x16x16xbf16>
    "tpu.trace_start"() <{level = 10 : i32, message = "hij,hjc->hic"}> : () -> ()
    %cst_20 = arith.constant dense<0.000000e+00> : vector<4x16x4xf32>
    %99 = tpu.matmul %98, %97, %cst_20 {dimension_numbers = #tpu.dot_dimension_numbers<[2], [1], [1], [2], [0, 0, 0, 1, 1, 2], [0], [0]>} : vector<4x16x16xbf16>, vector<4x16x4xbf16>, vector<4x16x4xf32> -> vector<4x16x4xf32>
    "tpu.trace_stop"() : () -> ()
    %100 = tpu.reciprocal %88 {approx = true} : vector<4x16x1xf32> -> vector<4x16x1xf32>
    %101 = vector.broadcast %100 : vector<4x16x1xf32> to vector<4x16x4xf32>
    %102 = arith.mulf %99, %101 : vector<4x16x4xf32>
    %103 = vector.extract_strided_slice %102 {offsets = [0, 0, 0], sizes = [1, 16, 4], strides = [1, 1, 1]} : vector<4x16x4xf32> to vector<1x16x4xf32>
    %104 = vector.shape_cast %103 : vector<1x16x4xf32> to vector<16x4xf32>
    %105 = vector.extract_strided_slice %102 {offsets = [1, 0, 0], sizes = [1, 16, 4], strides = [1, 1, 1]} : vector<4x16x4xf32> to vector<1x16x4xf32>
    %106 = vector.shape_cast %105 : vector<1x16x4xf32> to vector<16x4xf32>
    %107 = vector.extract_strided_slice %102 {offsets = [2, 0, 0], sizes = [1, 16, 4], strides = [1, 1, 1]} : vector<4x16x4xf32> to vector<1x16x4xf32>
    %108 = vector.shape_cast %107 : vector<1x16x4xf32> to vector<16x4xf32>
    %109 = vector.extract_strided_slice %102 {offsets = [3, 0, 0], sizes = [1, 16, 4], strides = [1, 1, 1]} : vector<4x16x4xf32> to vector<1x16x4xf32>
    %110 = vector.shape_cast %109 : vector<1x16x4xf32> to vector<16x4xf32>
    %111 = tpu.concatenate %104, %106, %108, %110 in 1 : vector<16x4xf32>, vector<16x4xf32>, vector<16x4xf32>, vector<16x4xf32> -> vector<16x16xf32>
    %112 = vector.broadcast %60 : vector<1x16xf32> to vector<16x16xf32>
    %113 = arith.addf %111, %112 : vector<16x16xf32>
    %114 = arith.negf %113 : vector<16x16xf32>
    %115 = math.exp %114 : vector<16x16xf32>
    %cst_21 = arith.constant 1.000000e+00 : f32
    %116 = vector.broadcast %cst_21 : f32 to vector<16x16xf32>
    %117 = arith.addf %116, %115 : vector<16x16xf32>
    %118 = arith.divf %116, %117 : vector<16x16xf32>
    %c0_22 = arith.constant 0 : index
    %c0_23 = arith.constant 0 : index
    %119 = vector.load %arg6[%c0_22, %c0_23] : memref<16x16xf32, #tpu.memory_space<vmem>>, vector<16x16xf32>
    tpu.vector_store %arg6[%c0_22, %c0_23], %118 {strides = array<i32>} : memref<16x16xf32, #tpu.memory_space<vmem>>, vector<16x16xf32>,
    return
  }
}

</mosaic_0001>

<llo_original>
// kernel: tpu_custom_call.1
$region0: #{tpu_custom_call.1}
  #allocation0 [shape = 'u32[]', space=smem, size = 0x4, offset = 0x4, fixed_abs, tag = 'smem constant byte address 0x4 - core index']
  #allocation1 [shape = 'u32[144,128]{1,0:T(1,128)}', space=vmem, size = 0x12000, scoped, tag = 'internal scratch']
  %s0 = inlined_call_operand.vmem [shape: f32[16,8], index: 0, kind: input, shape index: {}]
  %s1 = inlined_call_operand.vmem [shape: bf16[16,16], index: 1, kind: input, shape index: {}]
  %s2 = inlined_call_operand.vmem [shape: f32[8,136], index: 2, kind: input, shape index: {}]
  %s3 = inlined_call_operand.vmem [shape: f32[1,32], index: 3, kind: input, shape index: {}]
  %s4 = inlined_call_operand.hbm [shape: f32[32,136], index: 4, kind: input, shape index: {}]
  %s5 = inlined_call_operand.vmem [shape: f32[1,16], index: 5, kind: input, shape index: {}]
  %s6 = inlined_call_operand.hbm [shape: f32[16,16], index: 6, kind: output, shape index: {}]
  %s7 = sld [smem:[#allocation0]]
  $region38: #{tpu_custom_call.1} parent=0
    _
  %s9 = ssub.s32 1, %s7
  %s10 = scalar_select 0, %s9, %s7
  $region1: #{tpu_custom_call.1} parent=0
    #allocation2 [shape = 'u8[32768]{0}', space=vmem, size = 0x8000, scoped, tag = 'input window, operand 4, single buffered']
    #allocation3 [shape = 's32[1]{0}', space=sflag, size = 0x4, scoped, tag = 'scoped memory for tpu_custom_call.1']
    #allocation4 [shape = 's32[1]{0}', space=sflag, size = 0x4, scoped, tag = 'scoped memory for tpu_custom_call.1']
    #allocation5 [shape = 'u8[8192]{0}', space=vmem, size = 0x2000, scoped, tag = 'output window, operand 0, single buffered']
    %11 = vsyncpa [#allocation3], 0
    %12 = vsyncpa [#allocation4], 0
    // Predicated region
    $region2: #{tpu_custom_call.1} parent=1 // pred_check
      _
    $region3: #{tpu_custom_call.1} parent=1 // pred_check_branch
      %14 = sbr.rel (0) target = $region5
    $region4: #{tpu_custom_call.1} parent=1 // pred_region
      _
    $region5: #{tpu_custom_call.1} parent=1 // pred_fallthru
      _
    // Predicated region
    $region6: #{tpu_custom_call.1} parent=1 // pred_check
      _
    $region7: #{tpu_custom_call.1} parent=1 // pred_check_branch
      %16 = sbr.rel (0) target = $region9
    $region8: #{tpu_custom_call.1} parent=1 // pred_region
      _
    $region9: #{tpu_custom_call.1} parent=1 // pred_fallthru
      _
    // Predicated region
    $region10: #{tpu_custom_call.1} parent=1 // pred_check
      _
    $region11: #{tpu_custom_call.1} parent=1 // pred_check_branch
      %18 = sbr.rel (0) target = $region13
    $region12: #{tpu_custom_call.1} parent=1 // pred_region
      _
    $region13: #{tpu_custom_call.1} parent=1 // pred_fallthru
      _
    // Predicated region
    $region14: #{tpu_custom_call.1} parent=1 // pred_check
      _
    $region15: #{tpu_custom_call.1} parent=1 // pred_check_branch
      %20 = sbr.rel (0) target = $region17
    $region16: #{tpu_custom_call.1} parent=1 // pred_region
      _
    $region17: #{tpu_custom_call.1} parent=1 // pred_fallthru
      _
    // Predicated region
    $region18: #{tpu_custom_call.1} parent=1 // pred_check
      _
    $region19: #{tpu_custom_call.1} parent=1 // pred_check_branch
      %22 = sbr.rel (0) target = $region21
    $region20: #{tpu_custom_call.1} parent=1 // pred_region
      %s24 = ssub.s32 1024, 1024
      %25 = vsyncadd [#allocation3], %s24
      %s26 = sshll.u32 [#allocation2], 4
      %s27 = int_to_ptr.vmem [resolvable:$true] %s26
      %32 = dma.hbm_to_vmem [thread:$0]  %s4, 1024, %s27, [#allocation3], 256, 256, 16
    $region21: #{tpu_custom_call.1} parent=1 // pred_fallthru
      _
    // Predicated region
    $region22: #{tpu_custom_call.1} parent=1 // pred_check
      _
    $region23: #{tpu_custom_call.1} parent=1 // pred_check_branch
      %34 = sbr.rel (0) target = $region25
    $region24: #{tpu_custom_call.1} parent=1 // pred_region
      _
    $region25: #{tpu_custom_call.1} parent=1 // pred_fallthru
      _
    // Predicated region
    $region26: #{tpu_custom_call.1} parent=1 // pred_check
      _
    $region27: #{tpu_custom_call.1} parent=1 // pred_check_branch
      %36 = sbr.rel (0) target = $region29
    $region28: #{tpu_custom_call.1} parent=1 // pred_region
      %37 = dma.done [#allocation3], 1024
    $region29: #{tpu_custom_call.1} parent=1 // pred_fallthru
      _
    %v39 = vld [vmem:[%s1] sm:$0xf]
    %v40 = vld [vmem:[%s1 + $0x4] sm:$0xf]
    %v41 = vld [vmem:[%s0] sm:$0xff]
    %v42 = vld [vmem:[%s0 + $0x8] sm:$0xff]
    %v43 = vld [vmem:[%s2] sm:$0xff]
    %v44 = vld [vmem:[%s2 + $0x8] sm:$0xff]
    %v45 = vld [vmem:[%s3] sm:$0x1]
    %v46 = vpack.c.bf16 %v42, %v41
    %v47 = vpack.c.bf16 %v43, %v43
    %v48 = vpack.c.bf16 %v44, %v44
    %vm49 = vcmask 64512
    %v51 = vsel %vm49, %v46, 0
    %vm53 = vcmask 1043456
    %v55 = vsel %vm53, %v47, 0
    %v58 = vsel %vm53, %v48, 0
    %60 = vmatprep.subr.bf16.mxu0 %v58
    %61 = vmatpush1.bf16.msra.mxu0 %v55
    %62 = vmatprep.subr.bf16.mxu0 0
    %63 = vmatpush1.bf16.msra.mxu0 0
    %64 = vmatprep.subr.bf16.mxu0 0
    %65 = vmatpush1.bf16.msra.mxu0 0
    %66 = vmatprep.subr.bf16.mxu0 0
    %67 = vmatpush1.bf16.msra.mxu0 0
    %68 = vmatprep.subr.bf16.mxu0 0
    %69 = vmatpush1.bf16.msra.mxu0 0
    %70 = vmatprep.subr.bf16.mxu0 0
    %71 = vmatpush1.bf16.msra.mxu0 0
    %72 = vmatprep.subr.bf16.mxu0 0
    %73 = vmatpush1.bf16.msra.mxu0 0
    %74 = vmatprep.subr.bf16.mxu0 0
    %75 = vmatpush1.bf16.msra.mxu0 0
    %76 = vmatprep.subr.bf16.mxu0 0
    %77 = vmatpush1.bf16.msra.mxu0 0
    %78 = vmatprep.subr.bf16.mxu0 0
    %79 = vmatpush1.bf16.msra.mxu0 0
    %80 = vmatprep.subr.bf16.mxu0 0
    %81 = vmatpush1.bf16.msra.mxu0 0
    %82 = vmatprep.subr.bf16.mxu0 0
    %83 = vmatpush1.bf16.msra.mxu0 0
    %84 = vmatprep.subr.bf16.mxu0 0
    %85 = vmatpush1.bf16.msra.mxu0 0
    %86 = vmatprep.subr.bf16.mxu0 0
    %87 = vmatpush1.bf16.msra.mxu0 0
    %88 = vmatprep.subr.bf16.mxu0 0
    %89 = vmatpush1.bf16.msra.mxu0 0
    %90 = vmatprep.subr.bf16.mxu0 0
    %91 = vmatpush1.bf16.msra.mxu0 0
    %92 = vmatprep.mubr.bf16.mxu0 0
    %93 = vmatmul.mubr.bf16.gmra.mrb[0].mxu0 %v51
    %v94 = vpop.f32.mrb[0].mxu0
    %v95 = vadd.f32 0.0, %v94
    %v96 = vpop.f32.mrb[0].mxu0
    %v97 = vadd.f32 0.0, %v96
    %v98 = vpop.f32.mrb[0].mxu0
    %v99 = vadd.f32 0.0, %v98
    %v100 = vpop.f32.mrb[0].mxu0
    %v101 = vadd.f32 0.0, %v100
    %102 = vdwg.mxu0
    %v103 = vpack.c.bf16 %v99, %v95
    %106 = vrot.lane.b32.xlu0 %v97, 124
    %v107 = vpop.permute.xlu0 %106
    %108 = vrot.lane.b32.xlu0 %v101, 124
    %v109 = vpop.permute.xlu0 %108
    %112 = vxpose.xlu0.b32.start [1/16] %v107, 128
    %113 = vxpose.xlu0.b32.cont [2/16] %v109, 128
    %114 = vxpose.xlu0.b32.cont [3/16] 0.0, 128
    %115 = vxpose.xlu0.b32.cont [4/16] 0.0, 128
    %116 = vxpose.xlu0.b32.cont [5/16] 0.0, 128
    %117 = vxpose.xlu0.b32.cont [6/16] 0.0, 128
    %118 = vxpose.xlu0.b32.cont [7/16] 0.0, 128
    %119 = vxpose.xlu0.b32.cont [8/16] 0.0, 128
    %120 = vxpose.xlu0.b32.cont [9/16] 0.0, 128
    %121 = vxpose.xlu0.b32.cont [10/16] 0.0, 128
    %122 = vxpose.xlu0.b32.cont [11/16] 0.0, 128
    %123 = vxpose.xlu0.b32.cont [12/16] 0.0, 128
    %124 = vxpose.xlu0.b32.cont [13/16] 0.0, 128
    %125 = vxpose.xlu0.b32.cont [14/16] 0.0, 128
    %126 = vxpose.xlu0.b32.cont [15/16] 0.0, 128
    %127 = vxpose.xlu0.b32.end [16/16] 0.0, 128
    %v128 = vpop.trf.xlu0
    %v129 = vpop.trf.xlu0
    %v130 = vpop.trf.xlu0
    %v131 = vpop.trf.xlu0
    %v132 = vpop.trf.xlu0
    %v133 = vpop.trf.xlu0
    %v134 = vpop.trf.xlu0
    %v135 = vpop.trf.xlu0
    %v136 = vpop.trf.xlu0
    %v137 = vpop.trf.xlu0
    %v138 = vpop.trf.xlu0
    %v139 = vpop.trf.xlu0
    %v140 = vpop.trf.xlu0
    %v141 = vpop.trf.xlu0
    %v142 = vpop.trf.xlu0
    %v143 = vpop.trf.xlu0
    %v144 = vlaneseq
    %v145 = vshrl.u32 %v144, 7
    %v146 = vsub.s32 0, %v145
    %v147 = vrot.slane %v128, %v146
    %149 = vbcast.lane.b32.xlu0 %v147, 256
    %v150 = vpop.permute.xlu0 %149
    %s152 = sor.u32 256, 8
    %153 = vbcast.lane.b32.xlu0 %v147, %s152
    %v154 = vpop.permute.xlu0 %153
    %v155 = vlaneseq
    %v156 = vshrl.u32 %v155, 7
    %v157 = vsub.s32 1, %v156
    %v158 = vrot.slane %v128, %v157
    %160 = vbcast.lane.b32.xlu0 %v158, 256
    %v161 = vpop.permute.xlu0 %160
    %s163 = sor.u32 256, 8
    %164 = vbcast.lane.b32.xlu0 %v158, %s163
    %v165 = vpop.permute.xlu0 %164
    %v166 = vlaneseq
    %v167 = vshrl.u32 %v166, 7
    %v168 = vsub.s32 2, %v167
    %v169 = vrot.slane %v128, %v168
    %171 = vbcast.lane.b32.xlu0 %v169, 256
    %v172 = vpop.permute.xlu0 %171
    %s174 = sor.u32 256, 8
    %175 = vbcast.lane.b32.xlu0 %v169, %s174
    %v176 = vpop.permute.xlu0 %175
    %v177 = vlaneseq
    %v178 = vshrl.u32 %v177, 7
    %v179 = vsub.s32 3, %v178
    %v180 = vrot.slane %v128, %v179
    %182 = vbcast.lane.b32.xlu0 %v180, 256
    %v183 = vpop.permute.xlu0 %182
    %s185 = sor.u32 256, 8
    %186 = vbcast.lane.b32.xlu0 %v180, %s185
    %v187 = vpop.permute.xlu0 %186
    %188 = vxpose.xlu0.b32.start [1/16] %v97, 128
    %189 = vxpose.xlu0.b32.cont [2/16] %v101, 128
    %190 = vxpose.xlu0.b32.cont [3/16] 0.0, 128
    %191 = vxpose.xlu0.b32.cont [4/16] 0.0, 128
    %192 = vxpose.xlu0.b32.cont [5/16] 0.0, 128
    %193 = vxpose.xlu0.b32.cont [6/16] 0.0, 128
    %194 = vxpose.xlu0.b32.cont [7/16] 0.0, 128
    %195 = vxpose.xlu0.b32.cont [8/16] 0.0, 128
    %196 = vxpose.xlu0.b32.cont [9/16] 0.0, 128
    %197 = vxpose.xlu0.b32.cont [10/16] 0.0, 128
    %198 = vxpose.xlu0.b32.cont [11/16] 0.0, 128
    %199 = vxpose.xlu0.b32.cont [12/16] 0.0, 128
    %200 = vxpose.xlu0.b32.cont [13/16] 0.0, 128
    %201 = vxpose.xlu0.b32.cont [14/16] 0.0, 128
    %202 = vxpose.xlu0.b32.cont [15/16] 0.0, 128
    %203 = vxpose.xlu0.b32.end [16/16] 0.0, 128
    %v204 = vpop.trf.xlu0
    %v205 = vpop.trf.xlu0
    %v206 = vpop.trf.xlu0
    %v207 = vpop.trf.xlu0
    %v208 = vpop.trf.xlu0
    %v209 = vpop.trf.xlu0
    %v210 = vpop.trf.xlu0
    %v211 = vpop.trf.xlu0
    %v212 = vpop.trf.xlu0
    %v213 = vpop.trf.xlu0
    %v214 = vpop.trf.xlu0
    %v215 = vpop.trf.xlu0
    %v216 = vpop.trf.xlu0
    %v217 = vpop.trf.xlu0
    %v218 = vpop.trf.xlu0
    %v219 = vpop.trf.xlu0
    %v222 = vunpack.c.l.s4 1966171168
    %v223 = vunpack.c.0.s8 %v222
    %v224 = vlaneseq
    %v225 = vshrl.u32 %v224, 7
    %v226 = vsub.s32 %v223, %v225
    %v227 = vrot.slane %v204, %v226
    %v228 = vcombine.high %v227, %v227
    %v230 = vunpack.c.l.s4 1966171168
    %v231 = vunpack.c.0.s8 %v230
    %v232 = vlaneseq
    %v233 = vshrl.u32 %v232, 7
    %v234 = vsub.s32 %v231, %v233
    %v235 = vrot.slane %v227, %v234
    %v237 = vunpack.c.l.s4 1966171168
    %v238 = vunpack.c.0.s8 %v237
    %v239 = vlaneseq
    %v240 = vshrl.u32 %v239, 7
    %v241 = vsub.s32 %v238, %v240
    %v242 = vrot.slane %v228, %v241
    %v243 = vcombine.high %v235, %v235
    %v244 = vcombine.high %v242, %v242
    %v245 = vlaneseq
    %v246 = vshrl.u32 %v245, 7
    %v247 = vsub.s32 0, %v246
    %v248 = vrot.slane %v235, %v247
    %v249 = vlaneseq
    %v250 = vshrl.u32 %v249, 7
    %v251 = vsub.s32 0, %v250
    %v252 = vrot.slane %v242, %v251
    %v253 = vlaneseq
    %v254 = vshrl.u32 %v253, 7
    %v255 = vsub.s32 0, %v254
    %v256 = vrot.slane %v243, %v255
    %v257 = vlaneseq
    %v258 = vshrl.u32 %v257, 7
    %v259 = vsub.s32 0, %v258
    %v260 = vrot.slane %v244, %v259
    %v265 = vadd.f32 %v150, %v248
    %v266 = vadd.f32 %v154, %v248
    %v267 = vadd.f32 %v161, %v252
    %v268 = vadd.f32 %v165, %v252
    %v269 = vadd.f32 %v172, %v256
    %v270 = vadd.f32 %v176, %v256
    %v271 = vadd.f32 %v183, %v260
    %v272 = vadd.f32 %v187, %v260
    %v273 = vmul.f32 %v265, 0.2
    %v274 = vmul.f32 %v266, 0.2
    %v275 = vmul.f32 %v267, 0.2
    %v276 = vmul.f32 %v268, 0.2
    %v277 = vmul.f32 %v269, 0.2
    %v278 = vmul.f32 %v270, 0.2
    %v279 = vmul.f32 %v271, 0.2
    %v280 = vmul.f32 %v272, 0.2
    %v281 = vmax.f32 %v265, %v273
    %v282 = vmax.f32 %v266, %v274
    %v283 = vmax.f32 %v267, %v275
    %v284 = vmax.f32 %v268, %v276
    %v285 = vmax.f32 %v269, %v277
    %v286 = vmax.f32 %v270, %v278
    %v287 = vmax.f32 %v271, %v279
    %v288 = vmax.f32 %v272, %v280
    %v289 = vunpack.c.l.bf16 %v39
    %v290 = vunpack.c.l.bf16 %v40
    %v291 = vadd.f32 %v281, %v289
    %v292 = vadd.f32 %v282, %v290
    %v293 = vadd.f32 %v283, %v289
    %v294 = vadd.f32 %v284, %v290
    %v295 = vadd.f32 %v285, %v289
    %v296 = vadd.f32 %v286, %v290
    %v297 = vadd.f32 %v287, %v289
    %v298 = vadd.f32 %v288, %v290
    %vm299 = vcmask 130048
    %v300 = vsel %vm299, %v291, -inf
    %301 = vmax.xlane.f32.xlu0 %v300
    %v302 = vpop.xlane.xlu0 %301
    %v303 = vsel %vm299, %v292, -inf
    %304 = vmax.xlane.f32.xlu0 %v303
    %v305 = vpop.xlane.xlu0 %304
    %v306 = vsel %vm299, %v293, -inf
    %307 = vmax.xlane.f32.xlu0 %v306
    %v308 = vpop.xlane.xlu0 %307
    %v309 = vsel %vm299, %v294, -inf
    %310 = vmax.xlane.f32.xlu0 %v309
    %v311 = vpop.xlane.xlu0 %310
    %v312 = vsel %vm299, %v295, -inf
    %313 = vmax.xlane.f32.xlu0 %v312
    %v314 = vpop.xlane.xlu0 %313
    %v315 = vsel %vm299, %v296, -inf
    %316 = vmax.xlane.f32.xlu0 %v315
    %v317 = vpop.xlane.xlu0 %316
    %v318 = vsel %vm299, %v297, -inf
    %319 = vmax.xlane.f32.xlu0 %v318
    %v320 = vpop.xlane.xlu0 %319
    %v321 = vsel %vm299, %v298, -inf
    %322 = vmax.xlane.f32.xlu0 %v321
    %v323 = vpop.xlane.xlu0 %322
    %v324 = vsub.f32 %v291, %v302
    %v325 = vsub.f32 %v292, %v305
    %v326 = vsub.f32 %v293, %v308
    %v327 = vsub.f32 %v294, %v311
    %v328 = vsub.f32 %v295, %v314
    %v329 = vsub.f32 %v296, %v317
    %v330 = vsub.f32 %v297, %v320
    %v331 = vsub.f32 %v298, %v323
    %v332 = vmul.f32 %v324, 1.442695
    %v333 = vpow.pop %v332
    %v334 = vmul.f32 %v325, 1.442695
    %v335 = vpow.pop %v334
    %v336 = vmul.f32 %v326, 1.442695
    %v337 = vpow.pop %v336
    %v338 = vmul.f32 %v327, 1.442695
    %v339 = vpow.pop %v338
    %v340 = vmul.f32 %v328, 1.442695
    %v341 = vpow.pop %v340
    %v342 = vmul.f32 %v329, 1.442695
    %v343 = vpow.pop %v342
    %v344 = vmul.f32 %v330, 1.442695
    %v345 = vpow.pop %v344
    %v346 = vmul.f32 %v331, 1.442695
    %v347 = vpow.pop %v346
    %v348 = vsel %vm299, %v333, 0.0
    %349 = vadd.xlane.f32.xlu0 %v348
    %v350 = vpop.xlane.xlu0 %349
    %v351 = vsel %vm299, %v335, 0.0
    %352 = vadd.xlane.f32.xlu0 %v351
    %v353 = vpop.xlane.xlu0 %352
    %v354 = vsel %vm299, %v337, 0.0
    %355 = vadd.xlane.f32.xlu0 %v354
    %v356 = vpop.xlane.xlu0 %355
    %v357 = vsel %vm299, %v339, 0.0
    %358 = vadd.xlane.f32.xlu0 %v357
    %v359 = vpop.xlane.xlu0 %358
    %v360 = vsel %vm299, %v341, 0.0
    %361 = vadd.xlane.f32.xlu0 %v360
    %v362 = vpop.xlane.xlu0 %361
    %v363 = vsel %vm299, %v343, 0.0
    %364 = vadd.xlane.f32.xlu0 %v363
    %v365 = vpop.xlane.xlu0 %364
    %v366 = vsel %vm299, %v345, 0.0
    %367 = vadd.xlane.f32.xlu0 %v366
    %v368 = vpop.xlane.xlu0 %367
    %v369 = vsel %vm299, %v347, 0.0
    %370 = vadd.xlane.f32.xlu0 %v369
    %v371 = vpop.xlane.xlu0 %370
    %373 = vrot.lane.b32.xlu0 %v103, 120
    %v374 = vpop.permute.xlu0 %373
    %376 = vrot.lane.b32.xlu0 %v103, 112
    %v377 = vpop.permute.xlu0 %376
    %379 = vrot.lane.b32.xlu0 %v103, 104
    %v380 = vpop.permute.xlu0 %379
    %v382 = vpack.c.bf16 %v335, %v333
    %v383 = vpack.c.bf16 %v339, %v337
    %v384 = vpack.c.bf16 %v343, %v341
    %v385 = vpack.c.bf16 %v347, %v345
    %v387 = vsel %vm299, %v382, 0
    %389 = vmatprep.subr.bf16.mxu0 0
    %390 = vmatpush1.bf16.msra.mxu0 %v103
    %391 = vmatprep.subr.bf16.mxu0 0
    %392 = vmatpush1.bf16.msra.mxu0 0
    %393 = vmatprep.subr.bf16.mxu0 0
    %394 = vmatpush1.bf16.msra.mxu0 0
    %395 = vmatprep.subr.bf16.mxu0 0
    %396 = vmatpush1.bf16.msra.mxu0 0
    %397 = vmatprep.subr.bf16.mxu0 0
    %398 = vmatpush1.bf16.msra.mxu0 0
    %399 = vmatprep.subr.bf16.mxu0 0
    %400 = vmatpush1.bf16.msra.mxu0 0
    %401 = vmatprep.subr.bf16.mxu0 0
    %402 = vmatpush1.bf16.msra.mxu0 0
    %403 = vmatprep.subr.bf16.mxu0 0
    %404 = vmatpush1.bf16.msra.mxu0 0
    %405 = vmatprep.subr.bf16.mxu0 0
    %406 = vmatpush1.bf16.msra.mxu0 0
    %407 = vmatprep.subr.bf16.mxu0 0
    %408 = vmatpush1.bf16.msra.mxu0 0
    %409 = vmatprep.subr.bf16.mxu0 0
    %410 = vmatpush1.bf16.msra.mxu0 0
    %411 = vmatprep.subr.bf16.mxu0 0
    %412 = vmatpush1.bf16.msra.mxu0 0
    %413 = vmatprep.subr.bf16.mxu0 0
    %414 = vmatpush1.bf16.msra.mxu0 0
    %415 = vmatprep.subr.bf16.mxu0 0
    %416 = vmatpush1.bf16.msra.mxu0 0
    %417 = vmatprep.subr.bf16.mxu0 0
    %418 = vmatpush1.bf16.msra.mxu0 0
    %419 = vmatprep.subr.bf16.mxu0 0
    %420 = vmatpush1.bf16.msra.mxu0 0
    %421 = vmatprep.mubr.bf16.mxu0 0
    %422 = vmatmul.mubr.bf16.gmra.mrb[0].mxu0 %v387
    %v423 = vpop.f32.mrb[0].mxu0
    %v424 = vadd.f32 0.0, %v423
    %v425 = vpop.f32.mrb[0].mxu0
    %v426 = vpop.f32.mrb[0].mxu0
    %v427 = vadd.f32 0.0, %v426
    %v428 = vpop.f32.mrb[0].mxu0
    %429 = vdwg.mxu0
    %v431 = vsel %vm299, %v383, 0
    %433 = vmatprep.subr.bf16.mxu0 0
    %434 = vmatpush1.bf16.msra.mxu0 %v374
    %435 = vmatprep.subr.bf16.mxu0 0
    %436 = vmatpush1.bf16.msra.mxu0 0
    %437 = vmatprep.subr.bf16.mxu0 0
    %438 = vmatpush1.bf16.msra.mxu0 0
    %439 = vmatprep.subr.bf16.mxu0 0
    %440 = vmatpush1.bf16.msra.mxu0 0
    %441 = vmatprep.subr.bf16.mxu0 0
    %442 = vmatpush1.bf16.msra.mxu0 0
    %443 = vmatprep.subr.bf16.mxu0 0
    %444 = vmatpush1.bf16.msra.mxu0 0
    %445 = vmatprep.subr.bf16.mxu0 0
    %446 = vmatpush1.bf16.msra.mxu0 0
    %447 = vmatprep.subr.bf16.mxu0 0
    %448 = vmatpush1.bf16.msra.mxu0 0
    %449 = vmatprep.subr.bf16.mxu0 0
    %450 = vmatpush1.bf16.msra.mxu0 0
    %451 = vmatprep.subr.bf16.mxu0 0
    %452 = vmatpush1.bf16.msra.mxu0 0
    %453 = vmatprep.subr.bf16.mxu0 0
    %454 = vmatpush1.bf16.msra.mxu0 0
    %455 = vmatprep.subr.bf16.mxu0 0
    %456 = vmatpush1.bf16.msra.mxu0 0
    %457 = vmatprep.subr.bf16.mxu0 0
    %458 = vmatpush1.bf16.msra.mxu0 0
    %459 = vmatprep.subr.bf16.mxu0 0
    %460 = vmatpush1.bf16.msra.mxu0 0
    %461 = vmatprep.subr.bf16.mxu0 0
    %462 = vmatpush1.bf16.msra.mxu0 0
    %463 = vmatprep.subr.bf16.mxu0 0
    %464 = vmatpush1.bf16.msra.mxu0 0
    %465 = vmatprep.mubr.bf16.mxu0 0
    %466 = vmatmul.mubr.bf16.gmra.mrb[0].mxu0 %v431
    %v467 = vpop.f32.mrb[0].mxu0
    %v468 = vadd.f32 0.0, %v467
    %v469 = vpop.f32.mrb[0].mxu0
    %v470 = vpop.f32.mrb[0].mxu0
    %v471 = vadd.f32 0.0, %v470
    %v472 = vpop.f32.mrb[0].mxu0
    %473 = vdwg.mxu0
    %v475 = vsel %vm299, %v384, 0
    %477 = vmatprep.subr.bf16.mxu0 0
    %478 = vmatpush1.bf16.msra.mxu0 %v377
    %479 = vmatprep.subr.bf16.mxu0 0
    %480 = vmatpush1.bf16.msra.mxu0 0
    %481 = vmatprep.subr.bf16.mxu0 0
    %482 = vmatpush1.bf16.msra.mxu0 0
    %483 = vmatprep.subr.bf16.mxu0 0
    %484 = vmatpush1.bf16.msra.mxu0 0
    %485 = vmatprep.subr.bf16.mxu0 0
    %486 = vmatpush1.bf16.msra.mxu0 0
    %487 = vmatprep.subr.bf16.mxu0 0
    %488 = vmatpush1.bf16.msra.mxu0 0
    %489 = vmatprep.subr.bf16.mxu0 0
    %490 = vmatpush1.bf16.msra.mxu0 0
    %491 = vmatprep.subr.bf16.mxu0 0
    %492 = vmatpush1.bf16.msra.mxu0 0
    %493 = vmatprep.subr.bf16.mxu0 0
    %494 = vmatpush1.bf16.msra.mxu0 0
    %495 = vmatprep.subr.bf16.mxu0 0
    %496 = vmatpush1.bf16.msra.mxu0 0
    %497 = vmatprep.subr.bf16.mxu0 0
    %498 = vmatpush1.bf16.msra.mxu0 0
    %499 = vmatprep.subr.bf16.mxu0 0
    %500 = vmatpush1.bf16.msra.mxu0 0
    %501 = vmatprep.subr.bf16.mxu0 0
    %502 = vmatpush1.bf16.msra.mxu0 0
    %503 = vmatprep.subr.bf16.mxu0 0
    %504 = vmatpush1.bf16.msra.mxu0 0
    %505 = vmatprep.subr.bf16.mxu0 0
    %506 = vmatpush1.bf16.msra.mxu0 0
    %507 = vmatprep.subr.bf16.mxu0 0
    %508 = vmatpush1.bf16.msra.mxu0 0
    %509 = vmatprep.mubr.bf16.mxu0 0
    %510 = vmatmul.mubr.bf16.gmra.mrb[0].mxu0 %v475
    %v511 = vpop.f32.mrb[0].mxu0
    %v512 = vadd.f32 0.0, %v511
    %v513 = vpop.f32.mrb[0].mxu0
    %v514 = vpop.f32.mrb[0].mxu0
    %v515 = vadd.f32 0.0, %v514
    %v516 = vpop.f32.mrb[0].mxu0
    %517 = vdwg.mxu0
    %v519 = vsel %vm299, %v385, 0
    %521 = vmatprep.subr.bf16.mxu0 0
    %522 = vmatpush1.bf16.msra.mxu0 %v380
    %523 = vmatprep.subr.bf16.mxu0 0
    %524 = vmatpush1.bf16.msra.mxu0 0
    %525 = vmatprep.subr.bf16.mxu0 0
    %526 = vmatpush1.bf16.msra.mxu0 0
    %527 = vmatprep.subr.bf16.mxu0 0
    %528 = vmatpush1.bf16.msra.mxu0 0
    %529 = vmatprep.subr.bf16.mxu0 0
    %530 = vmatpush1.bf16.msra.mxu0 0
    %531 = vmatprep.subr.bf16.mxu0 0
    %532 = vmatpush1.bf16.msra.mxu0 0
    %533 = vmatprep.subr.bf16.mxu0 0
    %534 = vmatpush1.bf16.msra.mxu0 0
    %535 = vmatprep.subr.bf16.mxu0 0
    %536 = vmatpush1.bf16.msra.mxu0 0
    %537 = vmatprep.subr.bf16.mxu0 0
    %538 = vmatpush1.bf16.msra.mxu0 0
    %539 = vmatprep.subr.bf16.mxu0 0
    %540 = vmatpush1.bf16.msra.mxu0 0
    %541 = vmatprep.subr.bf16.mxu0 0
    %542 = vmatpush1.bf16.msra.mxu0 0
    %543 = vmatprep.subr.bf16.mxu0 0
    %544 = vmatpush1.bf16.msra.mxu0 0
    %545 = vmatprep.subr.bf16.mxu0 0
    %546 = vmatpush1.bf16.msra.mxu0 0
    %547 = vmatprep.subr.bf16.mxu0 0
    %548 = vmatpush1.bf16.msra.mxu0 0
    %549 = vmatprep.subr.bf16.mxu0 0
    %550 = vmatpush1.bf16.msra.mxu0 0
    %551 = vmatprep.subr.bf16.mxu0 0
    %552 = vmatpush1.bf16.msra.mxu0 0
    %553 = vmatprep.mubr.bf16.mxu0 0
    %554 = vmatmul.mubr.bf16.gmra.mrb[0].mxu0 %v519
    %v555 = vpop.f32.mrb[0].mxu0
    %v556 = vadd.f32 0.0, %v555
    %v557 = vpop.f32.mrb[0].mxu0
    %v558 = vpop.f32.mrb[0].mxu0
    %v559 = vadd.f32 0.0, %v558
    %v560 = vpop.f32.mrb[0].mxu0
    %561 = vdwg.mxu0
    %v562 = vrcp.pop %v350
    %v563 = vrcp.pop %v353
    %v564 = vrcp.pop %v356
    %v565 = vrcp.pop %v359
    %v566 = vrcp.pop %v362
    %v567 = vrcp.pop %v365
    %v568 = vrcp.pop %v368
    %v569 = vrcp.pop %v371
    %v570 = vmul.f32 %v424, %v562
    %v571 = vmul.f32 %v427, %v563
    %v572 = vmul.f32 %v468, %v564
    %v573 = vmul.f32 %v471, %v565
    %v574 = vmul.f32 %v512, %v566
    %v575 = vmul.f32 %v515, %v567
    %v576 = vmul.f32 %v556, %v568
    %v577 = vmul.f32 %v559, %v569
    %580 = vrot.lane.b32.xlu0 %v572, 8
    %v581 = vpop.permute.xlu0 %580
    %582 = vrot.lane.b32.xlu0 %v573, 8
    %v583 = vpop.permute.xlu0 %582
    %588 = vrot.lane.b32.xlu0 %v574, 16
    %v589 = vpop.permute.xlu0 %588
    %590 = vrot.lane.b32.xlu0 %v575, 16
    %v591 = vpop.permute.xlu0 %590
    %596 = vrot.lane.b32.xlu0 %v576, 24
    %v597 = vpop.permute.xlu0 %596
    %598 = vrot.lane.b32.xlu0 %v577, 24
    %v599 = vpop.permute.xlu0 %598
    %v602 = vsel %vm49, %v570, %v581
    %v603 = vsel %vm49, %v571, %v583
    %v604 = vsel %vm299, %v602, %v589
    %v605 = vsel %vm299, %v603, %v591
    %vm606 = vcmask 195584
    %v607 = vsel %vm606, %v604, %v597
    %v608 = vsel %vm606, %v605, %v599
    %v610 = vlaneseq
    %v611 = vshrl.u32 %v610, 7
    %v612 = vsub.s32 0, %v611
    %v613 = vrot.slane %v45, %v612
    %v615 = vadd.f32 %v607, %v613
    %v616 = vadd.f32 %v608, %v613
    %v617 = vmax.f32 %v615, 0.0
    %v618 = vmax.f32 %v616, 0.0
    %v619 = vld [vmem:[#allocation2] sm:$0xff]
    %v620 = vld [vmem:[#allocation2 + $0x8] sm:$0xff]
    %v621 = vld [vmem:[#allocation2 + $0x10] sm:$0xff]
    %v622 = vld [vmem:[#allocation2 + $0x18] sm:$0xff]
    %v623 = vld [vmem:[#allocation2 + $0x20] sm:$0xff]
    %v624 = vld [vmem:[#allocation2 + $0x28] sm:$0xff]
    %v625 = vld [vmem:[#allocation2 + $0x30] sm:$0xff]
    %v626 = vld [vmem:[#allocation2 + $0x38] sm:$0xff]
    %v627 = vld [vmem:[%s5] sm:$0x1]
    %v628 = vpack.c.bf16 %v618, %v617
    %v629 = vpack.c.bf16 %v621, %v619
    %v630 = vpack.c.bf16 %v622, %v620
    %v631 = vpack.c.bf16 %v625, %v623
    %v632 = vpack.c.bf16 %v626, %v624
    %vm633 = vcmask 261120
    %v635 = vsel %vm633, %v628, 0
    %637 = vmatprep.subr.bf16.mxu0 %v630
    %638 = vmatpush1.bf16.msra.mxu0 %v629
    %639 = vmatprep.subr.bf16.mxu0 %v632
    %640 = vmatpush1.bf16.msra.mxu0 %v631
    %641 = vmatprep.subr.bf16.mxu0 0
    %642 = vmatpush1.bf16.msra.mxu0 0
    %643 = vmatprep.subr.bf16.mxu0 0
    %644 = vmatpush1.bf16.msra.mxu0 0
    %645 = vmatprep.subr.bf16.mxu0 0
    %646 = vmatpush1.bf16.msra.mxu0 0
    %647 = vmatprep.subr.bf16.mxu0 0
    %648 = vmatpush1.bf16.msra.mxu0 0
    %649 = vmatprep.subr.bf16.mxu0 0
    %650 = vmatpush1.bf16.msra.mxu0 0
    %651 = vmatprep.subr.bf16.mxu0 0
    %652 = vmatpush1.bf16.msra.mxu0 0
    %653 = vmatprep.subr.bf16.mxu0 0
    %654 = vmatpush1.bf16.msra.mxu0 0
    %655 = vmatprep.subr.bf16.mxu0 0
    %656 = vmatpush1.bf16.msra.mxu0 0
    %657 = vmatprep.subr.bf16.mxu0 0
    %658 = vmatpush1.bf16.msra.mxu0 0
    %659 = vmatprep.subr.bf16.mxu0 0
    %660 = vmatpush1.bf16.msra.mxu0 0
    %661 = vmatprep.subr.bf16.mxu0 0
    %662 = vmatpush1.bf16.msra.mxu0 0
    %663 = vmatprep.subr.bf16.mxu0 0
    %664 = vmatpush1.bf16.msra.mxu0 0
    %665 = vmatprep.subr.bf16.mxu0 0
    %666 = vmatpush1.bf16.msra.mxu0 0
    %667 = vmatprep.subr.bf16.mxu0 0
    %668 = vmatpush1.bf16.msra.mxu0 0
    %669 = vmatprep.mubr.bf16.mxu0 0
    %670 = vmatmul.mubr.bf16.gmra.mrb[0].mxu0 %v635
    %v671 = vpop.f32.mrb[0].mxu0
    %v672 = vadd.f32 0.0, %v671
    %v673 = vpop.f32.mrb[0].mxu0
    %v674 = vadd.f32 0.0, %v673
    %v675 = vpop.f32.mrb[0].mxu0
    %v676 = vadd.f32 0.0, %v675
    %v677 = vpop.f32.mrb[0].mxu0
    %v678 = vadd.f32 0.0, %v677
    %679 = vdwg.mxu0
    %v680 = vpack.c.bf16 %v676, %v672
    %683 = vrot.lane.b32.xlu0 %v674, 124
    %v684 = vpop.permute.xlu0 %683
    %685 = vrot.lane.b32.xlu0 %v678, 124
    %v686 = vpop.permute.xlu0 %685
    %689 = vxpose.xlu0.b32.start [1/16] %v684, 128
    %690 = vxpose.xlu0.b32.cont [2/16] %v686, 128
    %691 = vxpose.xlu0.b32.cont [3/16] 0.0, 128
    %692 = vxpose.xlu0.b32.cont [4/16] 0.0, 128
    %693 = vxpose.xlu0.b32.cont [5/16] 0.0, 128
    %694 = vxpose.xlu0.b32.cont [6/16] 0.0, 128
    %695 = vxpose.xlu0.b32.cont [7/16] 0.0, 128
    %696 = vxpose.xlu0.b32.cont [8/16] 0.0, 128
    %697 = vxpose.xlu0.b32.cont [9/16] 0.0, 128
    %698 = vxpose.xlu0.b32.cont [10/16] 0.0, 128
    %699 = vxpose.xlu0.b32.cont [11/16] 0.0, 128
    %700 = vxpose.xlu0.b32.cont [12/16] 0.0, 128
    %701 = vxpose.xlu0.b32.cont [13/16] 0.0, 128
    %702 = vxpose.xlu0.b32.cont [14/16] 0.0, 128
    %703 = vxpose.xlu0.b32.cont [15/16] 0.0, 128
    %704 = vxpose.xlu0.b32.end [16/16] 0.0, 128
    %v705 = vpop.trf.xlu0
    %v706 = vpop.trf.xlu0
    %v707 = vpop.trf.xlu0
    %v708 = vpop.trf.xlu0
    %v709 = vpop.trf.xlu0
    %v710 = vpop.trf.xlu0
    %v711 = vpop.trf.xlu0
    %v712 = vpop.trf.xlu0
    %v713 = vpop.trf.xlu0
    %v714 = vpop.trf.xlu0
    %v715 = vpop.trf.xlu0
    %v716 = vpop.trf.xlu0
    %v717 = vpop.trf.xlu0
    %v718 = vpop.trf.xlu0
    %v719 = vpop.trf.xlu0
    %v720 = vpop.trf.xlu0
    %v721 = vlaneseq
    %v722 = vshrl.u32 %v721, 7
    %v723 = vsub.s32 0, %v722
    %v724 = vrot.slane %v705, %v723
    %726 = vbcast.lane.b32.xlu0 %v724, 256
    %v727 = vpop.permute.xlu0 %726
    %s729 = sor.u32 256, 8
    %730 = vbcast.lane.b32.xlu0 %v724, %s729
    %v731 = vpop.permute.xlu0 %730
    %v732 = vlaneseq
    %v733 = vshrl.u32 %v732, 7
    %v734 = vsub.s32 1, %v733
    %v735 = vrot.slane %v705, %v734
    %737 = vbcast.lane.b32.xlu0 %v735, 256
    %v738 = vpop.permute.xlu0 %737
    %s740 = sor.u32 256, 8
    %741 = vbcast.lane.b32.xlu0 %v735, %s740
    %v742 = vpop.permute.xlu0 %741
    %v743 = vlaneseq
    %v744 = vshrl.u32 %v743, 7
    %v745 = vsub.s32 2, %v744
    %v746 = vrot.slane %v705, %v745
    %748 = vbcast.lane.b32.xlu0 %v746, 256
    %v749 = vpop.permute.xlu0 %748
    %s751 = sor.u32 256, 8
    %752 = vbcast.lane.b32.xlu0 %v746, %s751
    %v753 = vpop.permute.xlu0 %752
    %v754 = vlaneseq
    %v755 = vshrl.u32 %v754, 7
    %v756 = vsub.s32 3, %v755
    %v757 = vrot.slane %v705, %v756
    %759 = vbcast.lane.b32.xlu0 %v757, 256
    %v760 = vpop.permute.xlu0 %759
    %s762 = sor.u32 256, 8
    %763 = vbcast.lane.b32.xlu0 %v757, %s762
    %v764 = vpop.permute.xlu0 %763
    %765 = vxpose.xlu0.b32.start [1/16] %v674, 128
    %766 = vxpose.xlu0.b32.cont [2/16] %v678, 128
    %767 = vxpose.xlu0.b32.cont [3/16] 0.0, 128
    %768 = vxpose.xlu0.b32.cont [4/16] 0.0, 128
    %769 = vxpose.xlu0.b32.cont [5/16] 0.0, 128
    %770 = vxpose.xlu0.b32.cont [6/16] 0.0, 128
    %771 = vxpose.xlu0.b32.cont [7/16] 0.0, 128
    %772 = vxpose.xlu0.b32.cont [8/16] 0.0, 128
    %773 = vxpose.xlu0.b32.cont [9/16] 0.0, 128
    %774 = vxpose.xlu0.b32.cont [10/16] 0.0, 128
    %775 = vxpose.xlu0.b32.cont [11/16] 0.0, 128
    %776 = vxpose.xlu0.b32.cont [12/16] 0.0, 128
    %777 = vxpose.xlu0.b32.cont [13/16] 0.0, 128
    %778 = vxpose.xlu0.b32.cont [14/16] 0.0, 128
    %779 = vxpose.xlu0.b32.cont [15/16] 0.0, 128
    %780 = vxpose.xlu0.b32.end [16/16] 0.0, 128
    %v781 = vpop.trf.xlu0
    %v782 = vpop.trf.xlu0
    %v783 = vpop.trf.xlu0
    %v784 = vpop.trf.xlu0
    %v785 = vpop.trf.xlu0
    %v786 = vpop.trf.xlu0
    %v787 = vpop.trf.xlu0
    %v788 = vpop.trf.xlu0
    %v789 = vpop.trf.xlu0
    %v790 = vpop.trf.xlu0
    %v791 = vpop.trf.xlu0
    %v792 = vpop.trf.xlu0
    %v793 = vpop.trf.xlu0
    %v794 = vpop.trf.xlu0
    %v795 = vpop.trf.xlu0
    %v796 = vpop.trf.xlu0
    %v799 = vunpack.c.l.s4 1966171168
    %v800 = vunpack.c.0.s8 %v799
    %v801 = vlaneseq
    %v802 = vshrl.u32 %v801, 7
    %v803 = vsub.s32 %v800, %v802
    %v804 = vrot.slane %v781, %v803
    %v805 = vcombine.high %v804, %v804
    %v807 = vunpack.c.l.s4 1966171168
    %v808 = vunpack.c.0.s8 %v807
    %v809 = vlaneseq
    %v810 = vshrl.u32 %v809, 7
    %v811 = vsub.s32 %v808, %v810
    %v812 = vrot.slane %v804, %v811
    %v814 = vunpack.c.l.s4 1966171168
    %v815 = vunpack.c.0.s8 %v814
    %v816 = vlaneseq
    %v817 = vshrl.u32 %v816, 7
    %v818 = vsub.s32 %v815, %v817
    %v819 = vrot.slane %v805, %v818
    %v820 = vcombine.high %v812, %v812
    %v821 = vcombine.high %v819, %v819
    %v822 = vlaneseq
    %v823 = vshrl.u32 %v822, 7
    %v824 = vsub.s32 0, %v823
    %v825 = vrot.slane %v812, %v824
    %v826 = vlaneseq
    %v827 = vshrl.u32 %v826, 7
    %v828 = vsub.s32 0, %v827
    %v829 = vrot.slane %v819, %v828
    %v830 = vlaneseq
    %v831 = vshrl.u32 %v830, 7
    %v832 = vsub.s32 0, %v831
    %v833 = vrot.slane %v820, %v832
    %v834 = vlaneseq
    %v835 = vshrl.u32 %v834, 7
    %v836 = vsub.s32 0, %v835
    %v837 = vrot.slane %v821, %v836
    %v842 = vadd.f32 %v727, %v825
    %v843 = vadd.f32 %v731, %v825
    %v844 = vadd.f32 %v738, %v829
    %v845 = vadd.f32 %v742, %v829
    %v846 = vadd.f32 %v749, %v833
    %v847 = vadd.f32 %v753, %v833
    %v848 = vadd.f32 %v760, %v837
    %v849 = vadd.f32 %v764, %v837
    %v850 = vmul.f32 %v842, 0.2
    %v851 = vmul.f32 %v843, 0.2
    %v852 = vmul.f32 %v844, 0.2
    %v853 = vmul.f32 %v845, 0.2
    %v854 = vmul.f32 %v846, 0.2
    %v855 = vmul.f32 %v847, 0.2
    %v856 = vmul.f32 %v848, 0.2
    %v857 = vmul.f32 %v849, 0.2
    %v858 = vmax.f32 %v842, %v850
    %v859 = vmax.f32 %v843, %v851
    %v860 = vmax.f32 %v844, %v852
    %v861 = vmax.f32 %v845, %v853
    %v862 = vmax.f32 %v846, %v854
    %v863 = vmax.f32 %v847, %v855
    %v864 = vmax.f32 %v848, %v856
    %v865 = vmax.f32 %v849, %v857
    %v866 = vadd.f32 %v858, %v289
    %v867 = vadd.f32 %v859, %v290
    %v868 = vadd.f32 %v860, %v289
    %v869 = vadd.f32 %v861, %v290
    %v870 = vadd.f32 %v862, %v289
    %v871 = vadd.f32 %v863, %v290
    %v872 = vadd.f32 %v864, %v289
    %v873 = vadd.f32 %v865, %v290
    %v874 = vsel %vm299, %v866, -inf
    %875 = vmax.xlane.f32.xlu0 %v874
    %v876 = vpop.xlane.xlu0 %875
    %v877 = vsel %vm299, %v867, -inf
    %878 = vmax.xlane.f32.xlu0 %v877
    %v879 = vpop.xlane.xlu0 %878
    %v880 = vsel %vm299, %v868, -inf
    %881 = vmax.xlane.f32.xlu0 %v880
    %v882 = vpop.xlane.xlu0 %881
    %v883 = vsel %vm299, %v869, -inf
    %884 = vmax.xlane.f32.xlu0 %v883
    %v885 = vpop.xlane.xlu0 %884
    %v886 = vsel %vm299, %v870, -inf
    %887 = vmax.xlane.f32.xlu0 %v886
    %v888 = vpop.xlane.xlu0 %887
    %v889 = vsel %vm299, %v871, -inf
    %890 = vmax.xlane.f32.xlu0 %v889
    %v891 = vpop.xlane.xlu0 %890
    %v892 = vsel %vm299, %v872, -inf
    %893 = vmax.xlane.f32.xlu0 %v892
    %v894 = vpop.xlane.xlu0 %893
    %v895 = vsel %vm299, %v873, -inf
    %896 = vmax.xlane.f32.xlu0 %v895
    %v897 = vpop.xlane.xlu0 %896
    %v898 = vsub.f32 %v866, %v876
    %v899 = vsub.f32 %v867, %v879
    %v900 = vsub.f32 %v868, %v882
    %v901 = vsub.f32 %v869, %v885
    %v902 = vsub.f32 %v870, %v888
    %v903 = vsub.f32 %v871, %v891
    %v904 = vsub.f32 %v872, %v894
    %v905 = vsub.f32 %v873, %v897
    %v906 = vmul.f32 %v898, 1.442695
    %v907 = vpow.pop %v906
    %v908 = vmul.f32 %v899, 1.442695
    %v909 = vpow.pop %v908
    %v910 = vmul.f32 %v900, 1.442695
    %v911 = vpow.pop %v910
    %v912 = vmul.f32 %v901, 1.442695
    %v913 = vpow.pop %v912
    %v914 = vmul.f32 %v902, 1.442695
    %v915 = vpow.pop %v914
    %v916 = vmul.f32 %v903, 1.442695
    %v917 = vpow.pop %v916
    %v918 = vmul.f32 %v904, 1.442695
    %v919 = vpow.pop %v918
    %v920 = vmul.f32 %v905, 1.442695
    %v921 = vpow.pop %v920
    %v922 = vsel %vm299, %v907, 0.0
    %923 = vadd.xlane.f32.xlu0 %v922
    %v924 = vpop.xlane.xlu0 %923
    %v925 = vsel %vm299, %v909, 0.0
    %926 = vadd.xlane.f32.xlu0 %v925
    %v927 = vpop.xlane.xlu0 %926
    %v928 = vsel %vm299, %v911, 0.0
    %929 = vadd.xlane.f32.xlu0 %v928
    %v930 = vpop.xlane.xlu0 %929
    %v931 = vsel %vm299, %v913, 0.0
    %932 = vadd.xlane.f32.xlu0 %v931
    %v933 = vpop.xlane.xlu0 %932
    %v934 = vsel %vm299, %v915, 0.0
    %935 = vadd.xlane.f32.xlu0 %v934
    %v936 = vpop.xlane.xlu0 %935
    %v937 = vsel %vm299, %v917, 0.0
    %938 = vadd.xlane.f32.xlu0 %v937
    %v939 = vpop.xlane.xlu0 %938
    %v940 = vsel %vm299, %v919, 0.0
    %941 = vadd.xlane.f32.xlu0 %v940
    %v942 = vpop.xlane.xlu0 %941
    %v943 = vsel %vm299, %v921, 0.0
    %944 = vadd.xlane.f32.xlu0 %v943
    %v945 = vpop.xlane.xlu0 %944
    %947 = vrot.lane.b32.xlu0 %v680, 124
    %v948 = vpop.permute.xlu0 %947
    %950 = vrot.lane.b32.xlu0 %v680, 120
    %v951 = vpop.permute.xlu0 %950
    %953 = vrot.lane.b32.xlu0 %v680, 116
    %v954 = vpop.permute.xlu0 %953
    %v956 = vpack.c.bf16 %v909, %v907
    %v957 = vpack.c.bf16 %v913, %v911
    %v958 = vpack.c.bf16 %v917, %v915
    %v959 = vpack.c.bf16 %v921, %v919
    %v961 = vsel %vm299, %v956, 0
    %963 = vmatprep.subr.bf16.mxu0 0
    %964 = vmatpush1.bf16.msra.mxu0 %v680
    %965 = vmatprep.subr.bf16.mxu0 0
    %966 = vmatpush1.bf16.msra.mxu0 0
    %967 = vmatprep.subr.bf16.mxu0 0
    %968 = vmatpush1.bf16.msra.mxu0 0
    %969 = vmatprep.subr.bf16.mxu0 0
    %970 = vmatpush1.bf16.msra.mxu0 0
    %971 = vmatprep.subr.bf16.mxu0 0
    %972 = vmatpush1.bf16.msra.mxu0 0
    %973 = vmatprep.subr.bf16.mxu0 0
    %974 = vmatpush1.bf16.msra.mxu0 0
    %975 = vmatprep.subr.bf16.mxu0 0
    %976 = vmatpush1.bf16.msra.mxu0 0
    %977 = vmatprep.subr.bf16.mxu0 0
    %978 = vmatpush1.bf16.msra.mxu0 0
    %979 = vmatprep.subr.bf16.mxu0 0
    %980 = vmatpush1.bf16.msra.mxu0 0
    %981 = vmatprep.subr.bf16.mxu0 0
    %982 = vmatpush1.bf16.msra.mxu0 0
    %983 = vmatprep.subr.bf16.mxu0 0
    %984 = vmatpush1.bf16.msra.mxu0 0
    %985 = vmatprep.subr.bf16.mxu0 0
    %986 = vmatpush1.bf16.msra.mxu0 0
    %987 = vmatprep.subr.bf16.mxu0 0
    %988 = vmatpush1.bf16.msra.mxu0 0
    %989 = vmatprep.subr.bf16.mxu0 0
    %990 = vmatpush1.bf16.msra.mxu0 0
    %991 = vmatprep.subr.bf16.mxu0 0
    %992 = vmatpush1.bf16.msra.mxu0 0
    %993 = vmatprep.subr.bf16.mxu0 0
    %994 = vmatpush1.bf16.msra.mxu0 0
    %995 = vmatprep.mubr.bf16.mxu0 0
    %996 = vmatmul.mubr.bf16.gmra.mrb[0].mxu0 %v961
    %v997 = vpop.f32.mrb[0].mxu0
    %v998 = vadd.f32 0.0, %v997
    %v999 = vpop.f32.mrb[0].mxu0
    %v1000 = vpop.f32.mrb[0].mxu0
    %v1001 = vadd.f32 0.0, %v1000
    %v1002 = vpop.f32.mrb[0].mxu0
    %1003 = vdwg.mxu0
    %v1005 = vsel %vm299, %v957, 0
    %1007 = vmatprep.subr.bf16.mxu0 0
    %1008 = vmatpush1.bf16.msra.mxu0 %v948
    %1009 = vmatprep.subr.bf16.mxu0 0
    %1010 = vmatpush1.bf16.msra.mxu0 0
    %1011 = vmatprep.subr.bf16.mxu0 0
    %1012 = vmatpush1.bf16.msra.mxu0 0
    %1013 = vmatprep.subr.bf16.mxu0 0
    %1014 = vmatpush1.bf16.msra.mxu0 0
    %1015 = vmatprep.subr.bf16.mxu0 0
    %1016 = vmatpush1.bf16.msra.mxu0 0
    %1017 = vmatprep.subr.bf16.mxu0 0
    %1018 = vmatpush1.bf16.msra.mxu0 0
    %1019 = vmatprep.subr.bf16.mxu0 0
    %1020 = vmatpush1.bf16.msra.mxu0 0
    %1021 = vmatprep.subr.bf16.mxu0 0
    %1022 = vmatpush1.bf16.msra.mxu0 0
    %1023 = vmatprep.subr.bf16.mxu0 0
    %1024 = vmatpush1.bf16.msra.mxu0 0
    %1025 = vmatprep.subr.bf16.mxu0 0
    %1026 = vmatpush1.bf16.msra.mxu0 0
    %1027 = vmatprep.subr.bf16.mxu0 0
    %1028 = vmatpush1.bf16.msra.mxu0 0
    %1029 = vmatprep.subr.bf16.mxu0 0
    %1030 = vmatpush1.bf16.msra.mxu0 0
    %1031 = vmatprep.subr.bf16.mxu0 0
    %1032 = vmatpush1.bf16.msra.mxu0 0
    %1033 = vmatprep.subr.bf16.mxu0 0
    %1034 = vmatpush1.bf16.msra.mxu0 0
    %1035 = vmatprep.subr.bf16.mxu0 0
    %1036 = vmatpush1.bf16.msra.mxu0 0
    %1037 = vmatprep.subr.bf16.mxu0 0
    %1038 = vmatpush1.bf16.msra.mxu0 0
    %1039 = vmatprep.mubr.bf16.mxu0 0
    %1040 = vmatmul.mubr.bf16.gmra.mrb[0].mxu0 %v1005
    %v1041 = vpop.f32.mrb[0].mxu0
    %v1042 = vadd.f32 0.0, %v1041
    %v1043 = vpop.f32.mrb[0].mxu0
    %v1044 = vpop.f32.mrb[0].mxu0
    %v1045 = vadd.f32 0.0, %v1044
    %v1046 = vpop.f32.mrb[0].mxu0
    %1047 = vdwg.mxu0
    %v1049 = vsel %vm299, %v958, 0
    %1051 = vmatprep.subr.bf16.mxu0 0
    %1052 = vmatpush1.bf16.msra.mxu0 %v951
    %1053 = vmatprep.subr.bf16.mxu0 0
    %1054 = vmatpush1.bf16.msra.mxu0 0
    %1055 = vmatprep.subr.bf16.mxu0 0
    %1056 = vmatpush1.bf16.msra.mxu0 0
    %1057 = vmatprep.subr.bf16.mxu0 0
    %1058 = vmatpush1.bf16.msra.mxu0 0
    %1059 = vmatprep.subr.bf16.mxu0 0
    %1060 = vmatpush1.bf16.msra.mxu0 0
    %1061 = vmatprep.subr.bf16.mxu0 0
    %1062 = vmatpush1.bf16.msra.mxu0 0
    %1063 = vmatprep.subr.bf16.mxu0 0
    %1064 = vmatpush1.bf16.msra.mxu0 0
    %1065 = vmatprep.subr.bf16.mxu0 0
    %1066 = vmatpush1.bf16.msra.mxu0 0
    %1067 = vmatprep.subr.bf16.mxu0 0
    %1068 = vmatpush1.bf16.msra.mxu0 0
    %1069 = vmatprep.subr.bf16.mxu0 0
    %1070 = vmatpush1.bf16.msra.mxu0 0
    %1071 = vmatprep.subr.bf16.mxu0 0
    %1072 = vmatpush1.bf16.msra.mxu0 0
    %1073 = vmatprep.subr.bf16.mxu0 0
    %1074 = vmatpush1.bf16.msra.mxu0 0
    %1075 = vmatprep.subr.bf16.mxu0 0
    %1076 = vmatpush1.bf16.msra.mxu0 0
    %1077 = vmatprep.subr.bf16.mxu0 0
    %1078 = vmatpush1.bf16.msra.mxu0 0
    %1079 = vmatprep.subr.bf16.mxu0 0
    %1080 = vmatpush1.bf16.msra.mxu0 0
    %1081 = vmatprep.subr.bf16.mxu0 0
    %1082 = vmatpush1.bf16.msra.mxu0 0
    %1083 = vmatprep.mubr.bf16.mxu0 0
    %1084 = vmatmul.mubr.bf16.gmra.mrb[0].mxu0 %v1049
    %v1085 = vpop.f32.mrb[0].mxu0
    %v1086 = vadd.f32 0.0, %v1085
    %v1087 = vpop.f32.mrb[0].mxu0
    %v1088 = vpop.f32.mrb[0].mxu0
    %v1089 = vadd.f32 0.0, %v1088
    %v1090 = vpop.f32.mrb[0].mxu0
    %1091 = vdwg.mxu0
    %v1093 = vsel %vm299, %v959, 0
    %1095 = vmatprep.subr.bf16.mxu0 0
    %1096 = vmatpush1.bf16.msra.mxu0 %v954
    %1097 = vmatprep.subr.bf16.mxu0 0
    %1098 = vmatpush1.bf16.msra.mxu0 0
    %1099 = vmatprep.subr.bf16.mxu0 0
    %1100 = vmatpush1.bf16.msra.mxu0 0
    %1101 = vmatprep.subr.bf16.mxu0 0
    %1102 = vmatpush1.bf16.msra.mxu0 0
    %1103 = vmatprep.subr.bf16.mxu0 0
    %1104 = vmatpush1.bf16.msra.mxu0 0
    %1105 = vmatprep.subr.bf16.mxu0 0
    %1106 = vmatpush1.bf16.msra.mxu0 0
    %1107 = vmatprep.subr.bf16.mxu0 0
    %1108 = vmatpush1.bf16.msra.mxu0 0
    %1109 = vmatprep.subr.bf16.mxu0 0
    %1110 = vmatpush1.bf16.msra.mxu0 0
    %1111 = vmatprep.subr.bf16.mxu0 0
    %1112 = vmatpush1.bf16.msra.mxu0 0
    %1113 = vmatprep.subr.bf16.mxu0 0
    %1114 = vmatpush1.bf16.msra.mxu0 0
    %1115 = vmatprep.subr.bf16.mxu0 0
    %1116 = vmatpush1.bf16.msra.mxu0 0
    %1117 = vmatprep.subr.bf16.mxu0 0
    %1118 = vmatpush1.bf16.msra.mxu0 0
    %1119 = vmatprep.subr.bf16.mxu0 0
    %1120 = vmatpush1.bf16.msra.mxu0 0
    %1121 = vmatprep.subr.bf16.mxu0 0
    %1122 = vmatpush1.bf16.msra.mxu0 0
    %1123 = vmatprep.subr.bf16.mxu0 0
    %1124 = vmatpush1.bf16.msra.mxu0 0
    %1125 = vmatprep.subr.bf16.mxu0 0
    %1126 = vmatpush1.bf16.msra.mxu0 0
    %1127 = vmatprep.mubr.bf16.mxu0 0
    %1128 = vmatmul.mubr.bf16.gmra.mrb[0].mxu0 %v1093
    %v1129 = vpop.f32.mrb[0].mxu0
    %v1130 = vadd.f32 0.0, %v1129
    %v1131 = vpop.f32.mrb[0].mxu0
    %v1132 = vpop.f32.mrb[0].mxu0
    %v1133 = vadd.f32 0.0, %v1132
    %v1134 = vpop.f32.mrb[0].mxu0
    %1135 = vdwg.mxu0
    %v1136 = vrcp.pop %v924
    %v1137 = vrcp.pop %v927
    %v1138 = vrcp.pop %v930
    %v1139 = vrcp.pop %v933
    %v1140 = vrcp.pop %v936
    %v1141 = vrcp.pop %v939
    %v1142 = vrcp.pop %v942
    %v1143 = vrcp.pop %v945
    %v1144 = vmul.f32 %v998, %v1136
    %v1145 = vmul.f32 %v1001, %v1137
    %v1146 = vmul.f32 %v1042, %v1138
    %v1147 = vmul.f32 %v1045, %v1139
    %v1148 = vmul.f32 %v1086, %v1140
    %v1149 = vmul.f32 %v1089, %v1141
    %v1150 = vmul.f32 %v1130, %v1142
    %v1151 = vmul.f32 %v1133, %v1143
    %1154 = vrot.lane.b32.xlu0 %v1146, 4
    %v1155 = vpop.permute.xlu0 %1154
    %1156 = vrot.lane.b32.xlu0 %v1147, 4
    %v1157 = vpop.permute.xlu0 %1156
    %1162 = vrot.lane.b32.xlu0 %v1148, 8
    %v1163 = vpop.permute.xlu0 %1162
    %1164 = vrot.lane.b32.xlu0 %v1149, 8
    %v1165 = vpop.permute.xlu0 %1164
    %1170 = vrot.lane.b32.xlu0 %v1150, 12
    %v1171 = vpop.permute.xlu0 %1170
    %1172 = vrot.lane.b32.xlu0 %v1151, 12
    %v1173 = vpop.permute.xlu0 %1172
    %vm1176 = vcmask 31744
    %v1177 = vsel %vm1176, %v1144, %v1155
    %v1178 = vsel %vm1176, %v1145, %v1157
    %v1179 = vsel %vm49, %v1177, %v1163
    %v1180 = vsel %vm49, %v1178, %v1165
    %vm1181 = vcmask 97280
    %v1182 = vsel %vm1181, %v1179, %v1171
    %v1183 = vsel %vm1181, %v1180, %v1173
    %v1185 = vlaneseq
    %v1186 = vshrl.u32 %v1185, 7
    %v1187 = vsub.s32 0, %v1186
    %v1188 = vrot.slane %v627, %v1187
    %v1190 = vadd.f32 %v1182, %v1188
    %v1191 = vadd.f32 %v1183, %v1188
    %v1192 = vxor.u32 %v1190, 2147483648
    %v1193 = vxor.u32 %v1191, 2147483648
    %v1194 = vmul.f32 %v1192, 1.442695
    %v1195 = vpow.pop %v1194
    %v1196 = vmul.f32 %v1193, 1.442695
    %v1197 = vpow.pop %v1196
    %v1198 = vadd.f32 %v1195, 1.0
    %v1199 = vadd.f32 %v1197, 1.0
    %v1200 = vrcp.pop %v1198
    %v1201 = vmul.f32 1.0, %v1200
    %v1202 = vrcp.pop %v1199
    %v1203 = vmul.f32 1.0, %v1202
    %1204 = vst.msk [vmem:[#allocation5] sm:$0xff] %vm299, %v1201
    %1205 = vst.msk [vmem:[#allocation5 + $0x8] sm:$0xff] %vm299, %v1203
    // Predicated region
    $region30: #{tpu_custom_call.1} parent=1 // pred_check
      _
    $region31: #{tpu_custom_call.1} parent=1 // pred_check_branch
      %1207 = sbr.rel (0) target = $region33
    $region32: #{tpu_custom_call.1} parent=1 // pred_region
      %s1209 = ssub.s32 256, 256
      %1210 = vsyncadd [#allocation4], %s1209
      %s1211 = sshll.u32 [#allocation5], 4
      %s1212 = int_to_ptr.vmem [resolvable:$true] %s1211
      %1217 = dma.vmem_to_hbm [thread:$0]  %s1212, 256, %s6, [#allocation4], 128, 128, 8
    $region33: #{tpu_custom_call.1} parent=1 // pred_fallthru
      _
    // Predicated region
    $region34: #{tpu_custom_call.1} parent=1 // pred_check
      _
    $region35: #{tpu_custom_call.1} parent=1 // pred_check_branch
      %1219 = sbr.rel (0) target = $region37
    $region36: #{tpu_custom_call.1} parent=1 // pred_region
      %1220 = dma.done [#allocation4], 256
    $region37: #{tpu_custom_call.1} parent=1 // pred_fallthru
      _
    %1221 = vsyncpa [#allocation3], 1
    %1222 = vsyncpa [#allocation4], 1

</llo_original>
